<compile_context>
chip_gen: v5e
topology: v5e:2x2
jax: 0.10.0
libtpu: 0.0.40
codegen_flags: <defaults>
</compile_context>

<pallas_src>
import functools

import jax
import jax.numpy as jnp
from jax.experimental import pallas as pl
from jax.experimental.pallas import tpu as pltpu


def _normalize_kernel(x_ref, sb_ref, o_ref, *, tr):
    # x_ref : (TR, TL) tile of rows (one row = one (n, c) slice of H*W pixels)
    # sb_ref: (R_aux, 2) full per-row [scale, bias] table (f32, VMEM-resident:
    #         constant index_map -> fetched once, not re-DMA'd per grid step)
    # o_ref : (TR, TL)
    i = pl.program_id(0)
    start = pl.multiple_of(i * tr, tr)
    sb = sb_ref[pl.ds(start, tr), :]            # (TR, 2) f32
    scale = sb[:, 0:1]                          # (TR, 1), broadcasts over lanes
    bias = sb[:, 1:2]                           # (TR, 1)
    xv = x_ref[...].astype(jnp.float32)
    o_ref[...] = (xv * scale + bias).astype(o_ref.dtype)


def normalize_by_channel_mean_std(x, mean, std):
    """x: (N, C, H, W); mean, std: (C,). Returns (x - mean) / std per channel."""
    N, C, H, W = x.shape
    L = H * W
    R = N * C
    dtype = x.dtype
    itemsize = jnp.dtype(dtype).itemsize

    # Folded per-channel scale/bias, kept in f32 regardless of x dtype.
    # NOTE: std == 0 yields inf scale, same as the reference divide.
    std_f32 = std.astype(jnp.float32)
    scale_c = 1.0 / std_f32                                   # (C,)
    bias_c = -mean.astype(jnp.float32) / std_f32              # (C,)

    x2d = x.reshape(R, L)   # contiguous reshape: no copy, no extra HBM pass

    # --- Row tiling -------------------------------------------------------
    # Sublane multiple per dtype: (8,128) f32, (16,128) bf16, (32,128) int8/fp8.
    sub = {1: 32, 2: 16, 4: 8}.get(itemsize, 8)
    # ~4 MiB tiles: double-buffered in+out ~= 16 MiB, safe inside the 48 MiB
    # VMEM budget on every generation incl. v7x (64 MiB physical per TC).
    TILE_BYTES = 4 * 1024 * 1024
    bytes_per_row = max(L * itemsize, 1)
    tr = max(sub, (TILE_BYTES // bytes_per_row) // sub * sub)
    TR = R if tr >= R else tr          # multiple of `sub`, or the full row extent
    grid_r = pl.cdiv(R, TR)            # ragged last row block handled by Pallas

    # --- Lane tiling (only when the row grid is too short) -----------------
    # Ensure enough grid steps for double-buffering and for v7x's 2 TensorCores.
    TL = L
    if grid_r < 8 and L >= 4096:
        want = max(2, pl.cdiv(8, grid_r))
        tl = max(1024, pl.cdiv(pl.cdiv(L, want), 128) * 128)  # multiple of 128
        if tl < L:
            TL = tl
    grid_l = pl.cdiv(L, TL)            # ragged last lane block handled by Pallas

    # --- Per-row [scale, bias] table (tiny: R x 8 bytes) --------------------
    # Pad rows up to grid_r*TR so the in-kernel pl.ds slice never runs OOB;
    # padding uses scale=1 / bias=0 (never inf/nan). Output rows beyond R are
    # never written back by Pallas, so the pad values are inert.
    R_aux = grid_r * TR
    scale_rows = jnp.tile(scale_c, N)
    bias_rows = jnp.tile(bias_c, N)
    if R_aux != R:
        scale_rows = jnp.pad(scale_rows, (0, R_aux - R), constant_values=1.0)
        bias_rows = jnp.pad(bias_rows, (0, R_aux - R))
    aux = jnp.stack([scale_rows, bias_rows], axis=1)          # (R_aux, 2) f32

    out2d = pl.pallas_call(
        functools.partial(_normalize_kernel, tr=TR),
        out_shape=jax.ShapeDtypeStruct((R, L), dtype),
        grid=(grid_r, grid_l),
        in_specs=[
            pl.BlockSpec((TR, TL), lambda i, j: (i, j)),
            # Constant index_map: whole scale/bias table stays VMEM-resident
            # (one DMA for the entire grid instead of a sliver per step).
            pl.BlockSpec((R_aux, 2), lambda i, j: (0, 0)),
        ],
        out_specs=pl.BlockSpec((TR, TL), lambda i, j: (i, j)),
        compiler_params=pltpu.CompilerParams(
            dimension_semantics=("parallel", "parallel"),
            vmem_limit_bytes=48 * 1024 * 1024,
        ),
    )(x2d, aux)

    return out2d.reshape(N, C, H, W)


if __name__ == "__main__":
    # Deterministic "buffers" (mean, std of shape (C,), per module __init__).
    C = 4
    mean = jnp.array([0.485, 0.456, 0.406, 0.5], dtype=jnp.float32)
    std = jnp.array([0.229, 0.224, 0.225, 0.25], dtype=jnp.float32)

    key = jax.random.PRNGKey(0)
    x = jax.random.uniform(key, (2, C, 16, 16), dtype=jnp.float32)

    out = normalize_by_channel_mean_std(x, mean, std)
    out = jax.block_until_ready(out)

    # Reference check (plain JAX, same semantics as the PyTorch forward).
    ref = (x - mean[None, :, None, None]) / std[None, :, None, None]
    assert out.shape == x.shape and out.dtype == x.dtype
    assert jnp.allclose(out, ref, rtol=1e-6, atol=1e-6)

    print("KERNEL_OK")
</pallas_src>

<mosaic_0001>
module attributes {stable_mosaic.version = 11 : i64} {
  func.func @_normalize_kernel(%arg0: i32, %arg1: i32, %arg2: memref<8x256xf32, #tpu.memory_space<vmem>>, %arg3: memref<8x2xf32, #tpu.memory_space<vmem>>, %arg4: memref<8x256xf32, #tpu.memory_space<vmem>>) attributes {dimension_semantics = [#tpu.dimension_semantics<parallel>, #tpu.dimension_semantics<parallel>], iteration_bounds = array<i64: 1, 1>, scalar_prefetch = 0 : i64, scratch_operands = 0 : i64, tpu.core_type = #tpu.core_type<tc>, window_params = [{transform_indices = @transform_0, window_bounds = array<i64: 8, 256>}, {pipeline_mode = #tpu.pipeline_mode<synchronous>, transform_indices = @transform_1, window_bounds = array<i64: 8, 2>}, {transform_indices = @transform_2, window_bounds = array<i64: 8, 256>}]} {
    %c8_i32 = arith.constant 8 : i32
    %0 = arith.muli %arg0, %c8_i32 : i32
    %1 = tpu.assume_multiple %0, 8 : i32
    %2 = arith.index_cast %1 : i32 to index
    %c0 = arith.constant 0 : index
    %3 = vector.load %arg3[%2, %c0] : memref<8x2xf32, #tpu.memory_space<vmem>>, vector<8x2xf32>
    %4 = vector.extract_strided_slice %3 {offsets = [0, 0], sizes = [8, 1], strides = [1, 1]} : vector<8x2xf32> to vector<8x1xf32>
    %5 = vector.extract_strided_slice %3 {offsets = [0, 1], sizes = [8, 1], strides = [1, 1]} : vector<8x2xf32> to vector<8x1xf32>
    %c0_0 = arith.constant 0 : index
    %c0_1 = arith.constant 0 : index
    %6 = vector.load %arg2[%c0_0, %c0_1] : memref<8x256xf32, #tpu.memory_space<vmem>>, vector<8x256xf32>
    %7 = vector.broadcast %4 : vector<8x1xf32> to vector<8x256xf32>
    %8 = arith.mulf %6, %7 : vector<8x256xf32>
    %9 = vector.broadcast %5 : vector<8x1xf32> to vector<8x256xf32>
    %10 = arith.addf %8, %9 : vector<8x256xf32>
    %c0_2 = arith.constant 0 : index
    %c0_3 = arith.constant 0 : index
    %11 = vector.load %arg4[%c0_2, %c0_3] : memref<8x256xf32, #tpu.memory_space<vmem>>, vector<8x256xf32>
    tpu.vector_store %arg4[%c0_2, %c0_3], %10 {strides = array<i32>} : memref<8x256xf32, #tpu.memory_space<vmem>>, vector<8x256xf32>,
    return
  }
  func.func @transform_0(%arg0: i32, %arg1: i32) -> (i32, i32) {
    %c0_i32 = arith.constant 0 : i32
    return %arg0, %arg1 : i32, i32
  }
  func.func @transform_1(%arg0: i32, %arg1: i32) -> (i32, i32) {
    %c0_i32 = arith.constant 0 : i32
    %c0_i32_0 = arith.constant 0 : i32
    %c0_i32_1 = arith.constant 0 : i32
    return %c0_i32, %c0_i32_0 : i32, i32
  }
  func.func @transform_2(%arg0: i32, %arg1: i32) -> (i32, i32) {
    %c0_i32 = arith.constant 0 : i32
    return %arg0, %arg1 : i32, i32
  }
}

</mosaic_0001>

<llo_original>
// kernel: tpu_custom_call.1
$region0: #{tpu_custom_call.1}
  #allocation0 [shape = 'u32[]', space=smem, size = 0x4, offset = 0x4, fixed_abs, tag = 'smem constant byte address 0x4 - core index']
  #allocation1 [shape = 'u32[72,128]{1,0:T(1,128)}', space=vmem, size = 0x9000, scoped, tag = 'internal scratch']
  %s0 = inlined_call_operand.hbm [shape: f32[8,256], index: 0, kind: input, shape index: {}]
  %s1 = inlined_call_operand.vmem [shape: f32[8,2], index: 1, kind: input, shape index: {}]
  %s2 = inlined_call_operand.hbm [shape: f32[8,256], index: 2, kind: output, shape index: {}]
  %s3 = sld [smem:[#allocation0]]
  $region22: #{tpu_custom_call.1} parent=0
    _
  %s5 = ssub.s32 1, %s3
  %s6 = scalar_select 0, %s5, %s3
  $region1: #{tpu_custom_call.1} parent=0
    #allocation2 [shape = 'u8[8192]{0}', space=vmem, size = 0x2000, scoped, tag = 'input window, operand 0, single buffered']
    #allocation3 [shape = 's32[1]{0}', space=sflag, size = 0x4, scoped, tag = 'scoped memory for tpu_custom_call.1']
    #allocation4 [shape = 's32[1]{0}', space=sflag, size = 0x4, scoped, tag = 'scoped memory for tpu_custom_call.1']
    #allocation5 [shape = 'u8[8192]{0}', space=vmem, size = 0x2000, scoped, tag = 'output window, operand 0, single buffered']
    %7 = vsyncpa [#allocation3], 0
    %8 = vsyncpa [#allocation4], 0
    // Predicated region
    $region2: #{tpu_custom_call.1} parent=1 // pred_check
      _
    $region3: #{tpu_custom_call.1} parent=1 // pred_check_branch
      %10 = sbr.rel (0) target = $region5
    $region4: #{tpu_custom_call.1} parent=1 // pred_region
      %12 = vsyncadd [#allocation3], 0
      %s14 = sshll.u32 %s0, 4
      %s15 = int_to_ptr.hbm [resolvable:$true] %s14
      %s16 = sshll.u32 [#allocation2], 4
      %s17 = int_to_ptr.vmem [resolvable:$true] %s16
      %19 = dma.hbm_to_vmem [thread:$0]  %s15, 256, %s17, [#allocation3]
    $region5: #{tpu_custom_call.1} parent=1 // pred_fallthru
      _
    // Predicated region
    $region6: #{tpu_custom_call.1} parent=1 // pred_check
      _
    $region7: #{tpu_custom_call.1} parent=1 // pred_check_branch
      %21 = sbr.rel (0) target = $region9
    $region8: #{tpu_custom_call.1} parent=1 // pred_region
      _
    $region9: #{tpu_custom_call.1} parent=1 // pred_fallthru
      _
    // Predicated region
    $region10: #{tpu_custom_call.1} parent=1 // pred_check
      _
    $region11: #{tpu_custom_call.1} parent=1 // pred_check_branch
      %23 = sbr.rel (0) target = $region13
    $region12: #{tpu_custom_call.1} parent=1 // pred_region
      %25 = dma.done [#allocation3], 256
    $region13: #{tpu_custom_call.1} parent=1 // pred_fallthru
      _
    %s26 = smul.u32 0, 8
    %s27 = scalar_lea.vmem %s1, %s26
    %v28 = vld [vmem:[%s27] sm:$0xff]
    %v29 = vld [vmem:[#allocation2] sm:$0xff]
    %v30 = vld [vmem:[#allocation2 + $0x8] sm:$0xff]
    %32 = vset.pattern.permute.xlu0 0
    %33 = vperm.xlu0 %32, %v28
    %v34 = vpop.permute.xlu0 %33
    %v36 = vmul.f32 %v29, %v34
    %v37 = vmul.f32 %v30, %v34
    %38 = vset.pattern.permute.xlu0 1
    %39 = vperm.xlu0 %38, %v28
    %v40 = vpop.permute.xlu0 %39
    %v42 = vadd.f32 %v36, %v40
    %v43 = vadd.f32 %v37, %v40
    %44 = vst [vmem:[#allocation5] sm:$0xff] %v42
    %45 = vst [vmem:[#allocation5 + $0x8] sm:$0xff] %v43
    // Predicated region
    $region14: #{tpu_custom_call.1} parent=1 // pred_check
      _
    $region15: #{tpu_custom_call.1} parent=1 // pred_check_branch
      %47 = sbr.rel (0) target = $region17
    $region16: #{tpu_custom_call.1} parent=1 // pred_region
      %49 = vsyncadd [#allocation4], 0
      %s51 = sshll.u32 [#allocation5], 4
      %s52 = int_to_ptr.vmem [resolvable:$true] %s51
      %s53 = sshll.u32 %s2, 4
      %s54 = int_to_ptr.hbm [resolvable:$true] %s53
      %56 = dma.vmem_to_hbm [thread:$0]  %s52, 256, %s54, [#allocation4]
    $region17: #{tpu_custom_call.1} parent=1 // pred_fallthru
      _
    // Predicated region
    $region18: #{tpu_custom_call.1} parent=1 // pred_check
      _
    $region19: #{tpu_custom_call.1} parent=1 // pred_check_branch
      %58 = sbr.rel (0) target = $region21
    $region20: #{tpu_custom_call.1} parent=1 // pred_region
      %60 = dma.done [#allocation4], 256
    $region21: #{tpu_custom_call.1} parent=1 // pred_fallthru
      _
    %61 = vsyncpa [#allocation3], 1
    %62 = vsyncpa [#allocation4], 1

</llo_original>
